<compile_context>
chip_gen: v7x
topology: tpu7x:2x2x1
jax: 0.10.0
libtpu: 0.0.40
codegen_flags: <defaults>
</compile_context>

<pallas_src>
import jax
import jax.numpy as jnp
from jax.experimental import pallas as pl
from jax.experimental.pallas import tpu as pltpu


def _linear_kernel(x_ref, w_ref, b_ref, o_ref, acc_ref):
    """One (tm, tn) output tile, accumulated over the k grid axis.

    acc_ref is an f32 VMEM scratch that stays resident across k steps; the
    bias add + downcast happen exactly once, on the last k step.
    """
    k = pl.program_id(2)

    @pl.when(k == 0)
    def _init():
        acc_ref[...] = jnp.zeros_like(acc_ref)

    acc_ref[...] += jnp.dot(
        x_ref[...], w_ref[...], preferred_element_type=jnp.float32
    )

    @pl.when(k == pl.num_programs(2) - 1)
    def _finalize():
        o_ref[...] = (
            acc_ref[...] + b_ref[...].astype(jnp.float32)
        ).astype(o_ref.dtype)


def _largest_tile(dim, preferred, multiple):
    """Largest divisor of `dim` that is <= `preferred` and a multiple of
    `multiple`; falls back to the full dim (full-extent blocks are always legal)."""
    if dim <= preferred:
        return dim
    t = (preferred // multiple) * multiple
    while t >= multiple:
        if dim % t == 0:
            return t
        t -= multiple
    return dim


def pallas_linear_forward(x, w, b, *, tm=None, tn=None, tk=None,
                          out_dtype=jnp.float32):
    """x: [M, K], w: [K, N], b: [1, N] -> [M, N] = x @ w + b."""
    M, K = x.shape
    K2, N = w.shape
    assert K == K2, (K, K2)
    assert b.shape == (1, N), b.shape

    # Tile sizes: lane-dense (multiples of 128) on N/K, sublane-aligned on M.
    # 256/512 tiles are friendly to both the v5e 128x128 and v6e/v7x 256x256 MXU
    # while keeping the per-step VMEM footprint small enough for every generation.
    if tm is None:
        tm = _largest_tile(M, 256, 8)
    if tn is None:
        tn = _largest_tile(N, 512, 128)
    if tk is None:
        tk = _largest_tile(K, 512, 128)
    assert M % tm == 0 and N % tn == 0 and K % tk == 0, (M, N, K, tm, tn, tk)

    grid = (M // tm, N // tn, K // tk)

    bytes_accessed = (
        x.size * x.dtype.itemsize
        + w.size * w.dtype.itemsize
        + b.size * b.dtype.itemsize
        + M * N * jnp.dtype(out_dtype).itemsize
    )

    return pl.pallas_call(
        _linear_kernel,
        out_shape=jax.ShapeDtypeStruct((M, N), out_dtype),
        grid_spec=pltpu.PrefetchScalarGridSpec(
            num_scalar_prefetch=0,
            grid=grid,
            in_specs=[
                pl.BlockSpec((tm, tk), lambda i, j, k: (i, k)),   # activations
                pl.BlockSpec((tk, tn), lambda i, j, k: (k, j)),   # weights
                pl.BlockSpec((1, tn), lambda i, j, k: (0, j)),    # bias
            ],
            out_specs=pl.BlockSpec((tm, tn), lambda i, j, k: (i, j)),
            scratch_shapes=[pltpu.VMEM((tm, tn), jnp.float32)],   # f32 accumulator
        ),
        compiler_params=pltpu.CompilerParams(
            dimension_semantics=("parallel", "parallel", "arbitrary"),
        ),
        cost_estimate=pl.CostEstimate(
            flops=2 * M * N * K,
            transcendentals=0,
            bytes_accessed=bytes_accessed,
        ),
    )(x, w, b)


class ModelBasePallas:
    """Minimal concrete stand-in for ModelBase: _build makes one Linear layer,
    _forward applies it via the Pallas kernel; forward() just wraps _forward()."""

    def __init__(self, d_in, d_out, key, param_dtype=jnp.bfloat16):
        k_w, k_b = jax.random.split(key)
        # Deterministic parameter init (synthetic; no checkpoint loading).
        # Weights kept in bf16: native MXU rate + half the HBM bytes streamed.
        self.w = (
            jax.random.normal(k_w, (d_in, d_out), jnp.float32)
            / jnp.sqrt(jnp.float32(d_in))
        ).astype(param_dtype)
        # Bias stays f32 (tiny; added once in the f32 epilogue).
        self.b = jax.random.normal(k_b, (1, d_out), jnp.float32) * 0.01

    def _forward(self, inputs):
        x = inputs.astype(self.w.dtype)  # bf16 activations for the MXU
        return pallas_linear_forward(x, self.w, self.b)

    def forward(self, inputs):
        # Wrapper for _forward() — mirrors ModelBase.forward semantics
        # (train-mode flag has no effect on a pure affine layer).
        return self._forward(inputs)

    def predict_on_batch(self, inputs):
        # eval-mode / no-grad is implicit in JAX functional execution.
        return self._forward(inputs)


if __name__ == "__main__":
    key = jax.random.PRNGKey(0)
    k_model, k_x = jax.random.split(key)

    # Small but tiling-exercising shapes: grid = (1, 2, 2) with tm=8, tn=tk=256,
    # so the k-accumulator path and the parallel j axis are both exercised.
    B, D_IN, D_OUT = 8, 512, 512
    model = ModelBasePallas(D_IN, D_OUT, k_model)
    x = jax.random.normal(k_x, (B, D_IN), jnp.float32)

    out = model.forward(x)
    jax.block_until_ready(out)

    # sanity check against plain-JAX reference (same bf16 inputs, f32 accumulate)
    ref = (
        jnp.dot(x.astype(jnp.bfloat16), model.w,
                preferred_element_type=jnp.float32)
        + model.b
    )
    assert out.shape == (B, D_OUT)
    assert out.dtype == jnp.float32
    assert jnp.allclose(out, ref, atol=1e-2, rtol=1e-2)

    print("KERNEL_OK")
</pallas_src>

<mosaic_0001>
module attributes {stable_mosaic.version = 11 : i64} {
  func.func @_linear_kernel(%arg0: i32, %arg1: i32, %arg2: i32, %arg3: memref<8x512xbf16, #tpu.memory_space<vmem>>, %arg4: memref<512x512xbf16, #tpu.memory_space<vmem>>, %arg5: memref<1x512xf32, #tpu.memory_space<vmem>>, %arg6: memref<8x512xf32, #tpu.memory_space<vmem>>, %arg7: memref<8x512xf32, #tpu.memory_space<vmem>>) attributes {dimension_semantics = [#tpu.dimension_semantics<parallel>, #tpu.dimension_semantics<parallel>, #tpu.dimension_semantics<arbitrary>], iteration_bounds = array<i64: 1, 1, 1>, scalar_prefetch = 0 : i64, scratch_operands = 1 : i64, tpu.core_type = #tpu.core_type<tc>, window_params = [{transform_indices = @transform_0, window_bounds = array<i64: 8, 512>}, {transform_indices = @transform_1, window_bounds = array<i64: 512, 512>}, {transform_indices = @transform_2, window_bounds = array<i64: 1, 512>}, {transform_indices = @transform_3, window_bounds = array<i64: 8, 512>}]} {
    %c0_i32 = arith.constant 0 : i32
    %0 = arith.cmpi eq, %arg2, %c0_i32 : i32
    %1 = arith.extui %0 : i1 to i32
    %c0_i32_0 = arith.constant 0 : i32
    %2 = arith.cmpi ne, %1, %c0_i32_0 : i32
    scf.if %2 {
      %cst_10 = arith.constant 0.000000e+00 : f32
      %12 = vector.broadcast %cst_10 : f32 to vector<8x512xf32>
      %c0_11 = arith.constant 0 : index
      %c0_12 = arith.constant 0 : index
      %13 = vector.load %arg7[%c0_11, %c0_12] : memref<8x512xf32, #tpu.memory_space<vmem>>, vector<8x512xf32>
      tpu.vector_store %arg7[%c0_11, %c0_12], %12 {strides = array<i32>} : memref<8x512xf32, #tpu.memory_space<vmem>>, vector<8x512xf32>,
    } else {
    }
    %c0 = arith.constant 0 : index
    %c0_1 = arith.constant 0 : index
    %3 = vector.load %arg7[%c0, %c0_1] : memref<8x512xf32, #tpu.memory_space<vmem>>, vector<8x512xf32>
    %c0_2 = arith.constant 0 : index
    %c0_3 = arith.constant 0 : index
    %4 = vector.load %arg3[%c0_2, %c0_3] : memref<8x512xbf16, #tpu.memory_space<vmem>>, vector<8x512xbf16>
    %c0_4 = arith.constant 0 : index
    %c0_5 = arith.constant 0 : index
    %5 = vector.load %arg4[%c0_4, %c0_5] : memref<512x512xbf16, #tpu.memory_space<vmem>>, vector<512x512xbf16>
    %cst = arith.constant dense<0.000000e+00> : vector<8x512xf32>
    %6 = tpu.matmul %4, %5, %cst {dimension_numbers = #tpu.dot_dimension_numbers<[1], [0], [0], [1], [0, 0, 1, 1], [], []>} : vector<8x512xbf16>, vector<512x512xbf16>, vector<8x512xf32> -> vector<8x512xf32>
    %7 = arith.addf %3, %6 : vector<8x512xf32>
    %c0_6 = arith.constant 0 : index
    %c0_7 = arith.constant 0 : index
    %8 = vector.load %arg7[%c0_6, %c0_7] : memref<8x512xf32, #tpu.memory_space<vmem>>, vector<8x512xf32>
    tpu.vector_store %arg7[%c0_6, %c0_7], %7 {strides = array<i32>} : memref<8x512xf32, #tpu.memory_space<vmem>>, vector<8x512xf32>,
    %c0_i32_8 = arith.constant 0 : i32
    %9 = arith.cmpi eq, %arg2, %c0_i32_8 : i32
    %10 = arith.extui %9 : i1 to i32
    %c0_i32_9 = arith.constant 0 : i32
    %11 = arith.cmpi ne, %10, %c0_i32_9 : i32
    scf.if %11 {
      %c0_10 = arith.constant 0 : index
      %c0_11 = arith.constant 0 : index
      %12 = vector.load %arg7[%c0_10, %c0_11] : memref<8x512xf32, #tpu.memory_space<vmem>>, vector<8x512xf32>
      %c0_12 = arith.constant 0 : index
      %c0_13 = arith.constant 0 : index
      %13 = vector.load %arg5[%c0_12, %c0_13] : memref<1x512xf32, #tpu.memory_space<vmem>>, vector<1x512xf32>
      %14 = vector.broadcast %13 : vector<1x512xf32> to vector<8x512xf32>
      %15 = arith.addf %12, %14 : vector<8x512xf32>
      %c0_14 = arith.constant 0 : index
      %c0_15 = arith.constant 0 : index
      %16 = vector.load %arg6[%c0_14, %c0_15] : memref<8x512xf32, #tpu.memory_space<vmem>>, vector<8x512xf32>
      tpu.vector_store %arg6[%c0_14, %c0_15], %15 {strides = array<i32>} : memref<8x512xf32, #tpu.memory_space<vmem>>, vector<8x512xf32>,
    } else {
    }
    return
  }
  func.func @transform_0(%arg0: i32, %arg1: i32, %arg2: i32) -> (i32, i32) {
    %c0_i32 = arith.constant 0 : i32
    return %arg0, %arg2 : i32, i32
  }
  func.func @transform_1(%arg0: i32, %arg1: i32, %arg2: i32) -> (i32, i32) {
    %c0_i32 = arith.constant 0 : i32
    return %arg2, %arg1 : i32, i32
  }
  func.func @transform_2(%arg0: i32, %arg1: i32, %arg2: i32) -> (i32, i32) {
    %c0_i32 = arith.constant 0 : i32
    %c0_i32_0 = arith.constant 0 : i32
    return %c0_i32, %arg1 : i32, i32
  }
  func.func @transform_3(%arg0: i32, %arg1: i32, %arg2: i32) -> (i32, i32) {
    %c0_i32 = arith.constant 0 : i32
    return %arg0, %arg1 : i32, i32
  }
}

</mosaic_0001>

<llo_original>
// kernel: tpu_custom_call.1
$region0: #{tpu_custom_call.1}
  #allocation0 [shape = 'u32[]', space=smem, size = 0x4, offset = 0x4, fixed_abs, tag = 'smem constant byte address 0x4 - core index']
  #allocation1 [shape = 'u32[144,128]{1,0:T(1,128)}', space=vmem, size = 0x12000, scoped, tag = 'internal scratch']
  #allocation2 [shape = 'f32[8,512]{1,0:T(8,128)}', space=vmem, size = 0x4000, scoped, tag = 'scratch operand']
  %s0 = inlined_call_operand.hbm [shape: bf16[8,512], index: 0, kind: input, shape index: {}]
  %s1 = inlined_call_operand.hbm [shape: bf16[512,512], index: 1, kind: input, shape index: {}]
  %s2 = inlined_call_operand.vmem [shape: f32[1,512], index: 2, kind: input, shape index: {}]
  %s3 = inlined_call_operand.hbm [shape: f32[8,512], index: 3, kind: output, shape index: {}]
  %s4 = sld [smem:[#allocation0]]
  $region38: #{tpu_custom_call.1} parent=0
    _
  %s6 = ssub.s32 1, %s4
  %s7 = scalar_select 0, %s6, %s4
  $region1: #{tpu_custom_call.1} parent=0
    #allocation3 [shape = 'u8[8192]{0}', space=vmem, size = 0x2000, scoped, tag = 'input window, operand 0, single buffered']
    #allocation4 [shape = 's32[1]{0}', space=sflag, size = 0x4, scoped, tag = 'scoped memory for tpu_custom_call.1']
    #allocation5 [shape = 's32[1]{0}', space=sflag, size = 0x4, scoped, tag = 'scoped memory for tpu_custom_call.1']
    #allocation6 [shape = 'u8[524288]{0}', space=vmem, size = 0x80000, scoped, tag = 'input window, operand 1, single buffered']
    #allocation7 [shape = 's32[1]{0}', space=sflag, size = 0x4, scoped, tag = 'scoped memory for tpu_custom_call.1']
    #allocation8 [shape = 'u8[16384]{0}', space=vmem, size = 0x4000, scoped, tag = 'output window, operand 0, single buffered']
    %8 = vsyncpa [#allocation4], 0
    %9 = vsyncpa [#allocation7], 0
    %10 = vsyncpa [#allocation5], 0
    // Predicated region
    $region2: #{tpu_custom_call.1} parent=1 // pred_check
      _
    $region3: #{tpu_custom_call.1} parent=1 // pred_check_branch
      %12 = sbr.rel (0) target = $region5
    $region4: #{tpu_custom_call.1} parent=1 // pred_region
      %s14 = ssub.s32 256, 256
      %15 = vsyncadd [#allocation4], %s14
      %s17 = sshll.u32 [#allocation3], 4
      %s18 = int_to_ptr.vmem [resolvable:$true] %s17
      %20 = dma.hbm_to_vmem [thread:$0]  %s0, 256, %s18, [#allocation4]
    $region5: #{tpu_custom_call.1} parent=1 // pred_fallthru
      _
    // Predicated region
    $region6: #{tpu_custom_call.1} parent=1 // pred_check
      _
    $region7: #{tpu_custom_call.1} parent=1 // pred_check_branch
      %22 = sbr.rel (0) target = $region9
    $region8: #{tpu_custom_call.1} parent=1 // pred_region
      %s24 = ssub.s32 16384, 16384
      %25 = vsyncadd [#allocation7], %s24
      %s26 = sshll.u32 [#allocation6], 4
      %s27 = int_to_ptr.vmem [resolvable:$true] %s26
      %32 = dma.hbm_to_vmem [thread:$0]  %s1, 16384, %s27, [#allocation7], 256, 256, 16
    $region9: #{tpu_custom_call.1} parent=1 // pred_fallthru
      _
    // Predicated region
    $region10: #{tpu_custom_call.1} parent=1 // pred_check
      _
    $region11: #{tpu_custom_call.1} parent=1 // pred_check_branch
      %34 = sbr.rel (0) target = $region13
    $region12: #{tpu_custom_call.1} parent=1 // pred_region
      _
    $region13: #{tpu_custom_call.1} parent=1 // pred_fallthru
      _
    // Predicated region
    $region14: #{tpu_custom_call.1} parent=1 // pred_check
      _
    $region15: #{tpu_custom_call.1} parent=1 // pred_check_branch
      %36 = sbr.rel (0) target = $region17
    $region16: #{tpu_custom_call.1} parent=1 // pred_region
      %37 = dma.done [#allocation4], 256
    $region17: #{tpu_custom_call.1} parent=1 // pred_fallthru
      _
    // Predicated region
    $region18: #{tpu_custom_call.1} parent=1 // pred_check
      _
    $region19: #{tpu_custom_call.1} parent=1 // pred_check_branch
      %39 = sbr.rel (0) target = $region21
    $region20: #{tpu_custom_call.1} parent=1 // pred_region
      %40 = dma.done [#allocation7], 16384
    $region21: #{tpu_custom_call.1} parent=1 // pred_fallthru
      _
    %p41 = scmp.eq.s32.totalorder 0, 0
    // Predicated region
    $region22: #{tpu_custom_call.1} parent=1 // pred_check
      %p42 = pneg %p41
    $region23: #{tpu_custom_call.1} parent=1 // pred_check_branch
      %44 = sbr.rel (%p42) target = $region25
    $region24: #{tpu_custom_call.1} parent=1 // pred_region
      %45 = vst [vmem:[#allocation2] sm:$0xff] 0.0
      %46 = vst [vmem:[#allocation2 + $0x8] sm:$0xff] 0.0
      %47 = vst [vmem:[#allocation2 + $0x10] sm:$0xff] 0.0
      %48 = vst [vmem:[#allocation2 + $0x18] sm:$0xff] 0.0
    $region25: #{tpu_custom_call.1} parent=1 // pred_fallthru
      _
    %v49 = vld [vmem:[#allocation2] sm:$0xff]
    %v50 = vld [vmem:[#allocation2 + $0x8] sm:$0xff]
    %v51 = vld [vmem:[#allocation2 + $0x10] sm:$0xff]
    %v52 = vld [vmem:[#allocation2 + $0x18] sm:$0xff]
    %v53 = vld [vmem:[#allocation3] sm:$0xff]
    %v54 = vld [vmem:[#allocation3 + $0x8] sm:$0xff]
    %v55 = vld [vmem:[#allocation6] sm:$0xff]
    %v56 = vld [vmem:[#allocation6 + $0x8] sm:$0xff]
    %v57 = vld [vmem:[#allocation6 + $0x10] sm:$0xff]
    %v58 = vld [vmem:[#allocation6 + $0x18] sm:$0xff]
    %v59 = vld [vmem:[#allocation6 + $0x20] sm:$0xff]
    %v60 = vld [vmem:[#allocation6 + $0x28] sm:$0xff]
    %v61 = vld [vmem:[#allocation6 + $0x30] sm:$0xff]
    %v62 = vld [vmem:[#allocation6 + $0x38] sm:$0xff]
    %v63 = vld [vmem:[#allocation6 + $0x40] sm:$0xff]
    %v64 = vld [vmem:[#allocation6 + $0x48] sm:$0xff]
    %v65 = vld [vmem:[#allocation6 + $0x50] sm:$0xff]
    %v66 = vld [vmem:[#allocation6 + $0x58] sm:$0xff]
    %v67 = vld [vmem:[#allocation6 + $0x60] sm:$0xff]
    %v68 = vld [vmem:[#allocation6 + $0x68] sm:$0xff]
    %v69 = vld [vmem:[#allocation6 + $0x70] sm:$0xff]
    %v70 = vld [vmem:[#allocation6 + $0x78] sm:$0xff]
    %v71 = vld [vmem:[#allocation6 + $0x80] sm:$0xff]
    %v72 = vld [vmem:[#allocation6 + $0x88] sm:$0xff]
    %v73 = vld [vmem:[#allocation6 + $0x90] sm:$0xff]
    %v74 = vld [vmem:[#allocation6 + $0x98] sm:$0xff]
    %v75 = vld [vmem:[#allocation6 + $0xa0] sm:$0xff]
    %v76 = vld [vmem:[#allocation6 + $0xa8] sm:$0xff]
    %v77 = vld [vmem:[#allocation6 + $0xb0] sm:$0xff]
    %v78 = vld [vmem:[#allocation6 + $0xb8] sm:$0xff]
    %v79 = vld [vmem:[#allocation6 + $0xc0] sm:$0xff]
    %v80 = vld [vmem:[#allocation6 + $0xc8] sm:$0xff]
    %v81 = vld [vmem:[#allocation6 + $0xd0] sm:$0xff]
    %v82 = vld [vmem:[#allocation6 + $0xd8] sm:$0xff]
    %v83 = vld [vmem:[#allocation6 + $0xe0] sm:$0xff]
    %v84 = vld [vmem:[#allocation6 + $0xe8] sm:$0xff]
    %v85 = vld [vmem:[#allocation6 + $0xf0] sm:$0xff]
    %v86 = vld [vmem:[#allocation6 + $0xf8] sm:$0xff]
    %v87 = vld [vmem:[#allocation6 + $0x100] sm:$0xff]
    %v88 = vld [vmem:[#allocation6 + $0x108] sm:$0xff]
    %v89 = vld [vmem:[#allocation6 + $0x110] sm:$0xff]
    %v90 = vld [vmem:[#allocation6 + $0x118] sm:$0xff]
    %v91 = vld [vmem:[#allocation6 + $0x120] sm:$0xff]
    %v92 = vld [vmem:[#allocation6 + $0x128] sm:$0xff]
    %v93 = vld [vmem:[#allocation6 + $0x130] sm:$0xff]
    %v94 = vld [vmem:[#allocation6 + $0x138] sm:$0xff]
    %v95 = vld [vmem:[#allocation6 + $0x140] sm:$0xff]
    %v96 = vld [vmem:[#allocation6 + $0x148] sm:$0xff]
    %v97 = vld [vmem:[#allocation6 + $0x150] sm:$0xff]
    %v98 = vld [vmem:[#allocation6 + $0x158] sm:$0xff]
    %v99 = vld [vmem:[#allocation6 + $0x160] sm:$0xff]
    %v100 = vld [vmem:[#allocation6 + $0x168] sm:$0xff]
    %v101 = vld [vmem:[#allocation6 + $0x170] sm:$0xff]
    %v102 = vld [vmem:[#allocation6 + $0x178] sm:$0xff]
    %v103 = vld [vmem:[#allocation6 + $0x180] sm:$0xff]
    %v104 = vld [vmem:[#allocation6 + $0x188] sm:$0xff]
    %v105 = vld [vmem:[#allocation6 + $0x190] sm:$0xff]
    %v106 = vld [vmem:[#allocation6 + $0x198] sm:$0xff]
    %v107 = vld [vmem:[#allocation6 + $0x1a0] sm:$0xff]
    %v108 = vld [vmem:[#allocation6 + $0x1a8] sm:$0xff]
    %v109 = vld [vmem:[#allocation6 + $0x1b0] sm:$0xff]
    %v110 = vld [vmem:[#allocation6 + $0x1b8] sm:$0xff]
    %v111 = vld [vmem:[#allocation6 + $0x1c0] sm:$0xff]
    %v112 = vld [vmem:[#allocation6 + $0x1c8] sm:$0xff]
    %v113 = vld [vmem:[#allocation6 + $0x1d0] sm:$0xff]
    %v114 = vld [vmem:[#allocation6 + $0x1d8] sm:$0xff]
    %v115 = vld [vmem:[#allocation6 + $0x1e0] sm:$0xff]
    %v116 = vld [vmem:[#allocation6 + $0x1e8] sm:$0xff]
    %v117 = vld [vmem:[#allocation6 + $0x1f0] sm:$0xff]
    %v118 = vld [vmem:[#allocation6 + $0x1f8] sm:$0xff]
    %v119 = vld [vmem:[#allocation6 + $0x200] sm:$0xff]
    %v120 = vld [vmem:[#allocation6 + $0x208] sm:$0xff]
    %v121 = vld [vmem:[#allocation6 + $0x210] sm:$0xff]
    %v122 = vld [vmem:[#allocation6 + $0x218] sm:$0xff]
    %v123 = vld [vmem:[#allocation6 + $0x220] sm:$0xff]
    %v124 = vld [vmem:[#allocation6 + $0x228] sm:$0xff]
    %v125 = vld [vmem:[#allocation6 + $0x230] sm:$0xff]
    %v126 = vld [vmem:[#allocation6 + $0x238] sm:$0xff]
    %v127 = vld [vmem:[#allocation6 + $0x240] sm:$0xff]
    %v128 = vld [vmem:[#allocation6 + $0x248] sm:$0xff]
    %v129 = vld [vmem:[#allocation6 + $0x250] sm:$0xff]
    %v130 = vld [vmem:[#allocation6 + $0x258] sm:$0xff]
    %v131 = vld [vmem:[#allocation6 + $0x260] sm:$0xff]
    %v132 = vld [vmem:[#allocation6 + $0x268] sm:$0xff]
    %v133 = vld [vmem:[#allocation6 + $0x270] sm:$0xff]
    %v134 = vld [vmem:[#allocation6 + $0x278] sm:$0xff]
    %v135 = vld [vmem:[#allocation6 + $0x280] sm:$0xff]
    %v136 = vld [vmem:[#allocation6 + $0x288] sm:$0xff]
    %v137 = vld [vmem:[#allocation6 + $0x290] sm:$0xff]
    %v138 = vld [vmem:[#allocation6 + $0x298] sm:$0xff]
    %v139 = vld [vmem:[#allocation6 + $0x2a0] sm:$0xff]
    %v140 = vld [vmem:[#allocation6 + $0x2a8] sm:$0xff]
    %v141 = vld [vmem:[#allocation6 + $0x2b0] sm:$0xff]
    %v142 = vld [vmem:[#allocation6 + $0x2b8] sm:$0xff]
    %v143 = vld [vmem:[#allocation6 + $0x2c0] sm:$0xff]
    %v144 = vld [vmem:[#allocation6 + $0x2c8] sm:$0xff]
    %v145 = vld [vmem:[#allocation6 + $0x2d0] sm:$0xff]
    %v146 = vld [vmem:[#allocation6 + $0x2d8] sm:$0xff]
    %v147 = vld [vmem:[#allocation6 + $0x2e0] sm:$0xff]
    %v148 = vld [vmem:[#allocation6 + $0x2e8] sm:$0xff]
    %v149 = vld [vmem:[#allocation6 + $0x2f0] sm:$0xff]
    %v150 = vld [vmem:[#allocation6 + $0x2f8] sm:$0xff]
    %v151 = vld [vmem:[#allocation6 + $0x300] sm:$0xff]
    %v152 = vld [vmem:[#allocation6 + $0x308] sm:$0xff]
    %v153 = vld [vmem:[#allocation6 + $0x310] sm:$0xff]
    %v154 = vld [vmem:[#allocation6 + $0x318] sm:$0xff]
    %v155 = vld [vmem:[#allocation6 + $0x320] sm:$0xff]
    %v156 = vld [vmem:[#allocation6 + $0x328] sm:$0xff]
    %v157 = vld [vmem:[#allocation6 + $0x330] sm:$0xff]
    %v158 = vld [vmem:[#allocation6 + $0x338] sm:$0xff]
    %v159 = vld [vmem:[#allocation6 + $0x340] sm:$0xff]
    %v160 = vld [vmem:[#allocation6 + $0x348] sm:$0xff]
    %v161 = vld [vmem:[#allocation6 + $0x350] sm:$0xff]
    %v162 = vld [vmem:[#allocation6 + $0x358] sm:$0xff]
    %v163 = vld [vmem:[#allocation6 + $0x360] sm:$0xff]
    %v164 = vld [vmem:[#allocation6 + $0x368] sm:$0xff]
    %v165 = vld [vmem:[#allocation6 + $0x370] sm:$0xff]
    %v166 = vld [vmem:[#allocation6 + $0x378] sm:$0xff]
    %v167 = vld [vmem:[#allocation6 + $0x380] sm:$0xff]
    %v168 = vld [vmem:[#allocation6 + $0x388] sm:$0xff]
    %v169 = vld [vmem:[#allocation6 + $0x390] sm:$0xff]
    %v170 = vld [vmem:[#allocation6 + $0x398] sm:$0xff]
    %v171 = vld [vmem:[#allocation6 + $0x3a0] sm:$0xff]
    %v172 = vld [vmem:[#allocation6 + $0x3a8] sm:$0xff]
    %v173 = vld [vmem:[#allocation6 + $0x3b0] sm:$0xff]
    %v174 = vld [vmem:[#allocation6 + $0x3b8] sm:$0xff]
    %v175 = vld [vmem:[#allocation6 + $0x3c0] sm:$0xff]
    %v176 = vld [vmem:[#allocation6 + $0x3c8] sm:$0xff]
    %v177 = vld [vmem:[#allocation6 + $0x3d0] sm:$0xff]
    %v178 = vld [vmem:[#allocation6 + $0x3d8] sm:$0xff]
    %v179 = vld [vmem:[#allocation6 + $0x3e0] sm:$0xff]
    %v180 = vld [vmem:[#allocation6 + $0x3e8] sm:$0xff]
    %v181 = vld [vmem:[#allocation6 + $0x3f0] sm:$0xff]
    %v182 = vld [vmem:[#allocation6 + $0x3f8] sm:$0xff]
    %v185 = vunpack.c.l.b16 %v53
    %v186 = vunpack.c.h.b16 %v53
    %v187 = vunpack.c.l.b16 %v54
    %v188 = vunpack.c.h.b16 %v54
    %v189 = vpack.c.b16 %v185, %v185
    %v190 = vpack.c.b16 %v186, %v186
    %v191 = vpack.c.b16 %v187, %v187
    %v192 = vpack.c.b16 %v188, %v188
    %v325 = vunpack.c.l.b16 %v55
    %v326 = vunpack.c.h.b16 %v55
    %v327 = vunpack.c.l.b16 %v56
    %v328 = vunpack.c.h.b16 %v56
    %v329 = vunpack.c.l.b16 %v57
    %v330 = vunpack.c.h.b16 %v57
    %v331 = vunpack.c.l.b16 %v58
    %v332 = vunpack.c.h.b16 %v58
    %v333 = vunpack.c.l.b16 %v59
    %v334 = vunpack.c.h.b16 %v59
    %v335 = vunpack.c.l.b16 %v60
    %v336 = vunpack.c.h.b16 %v60
    %v337 = vunpack.c.l.b16 %v61
    %v338 = vunpack.c.h.b16 %v61
    %v339 = vunpack.c.l.b16 %v62
    %v340 = vunpack.c.h.b16 %v62
    %v341 = vunpack.c.l.b16 %v63
    %v342 = vunpack.c.h.b16 %v63
    %v343 = vunpack.c.l.b16 %v64
    %v344 = vunpack.c.h.b16 %v64
    %v345 = vunpack.c.l.b16 %v65
    %v346 = vunpack.c.h.b16 %v65
    %v347 = vunpack.c.l.b16 %v66
    %v348 = vunpack.c.h.b16 %v66
    %v349 = vunpack.c.l.b16 %v67
    %v350 = vunpack.c.h.b16 %v67
    %v351 = vunpack.c.l.b16 %v68
    %v352 = vunpack.c.h.b16 %v68
    %v353 = vunpack.c.l.b16 %v69
    %v354 = vunpack.c.h.b16 %v69
    %v355 = vunpack.c.l.b16 %v70
    %v356 = vunpack.c.h.b16 %v70
    %v357 = vunpack.c.l.b16 %v71
    %v358 = vunpack.c.h.b16 %v71
    %v359 = vunpack.c.l.b16 %v72
    %v360 = vunpack.c.h.b16 %v72
    %v361 = vunpack.c.l.b16 %v73
    %v362 = vunpack.c.h.b16 %v73
    %v363 = vunpack.c.l.b16 %v74
    %v364 = vunpack.c.h.b16 %v74
    %v365 = vunpack.c.l.b16 %v75
    %v366 = vunpack.c.h.b16 %v75
    %v367 = vunpack.c.l.b16 %v76
    %v368 = vunpack.c.h.b16 %v76
    %v369 = vunpack.c.l.b16 %v77
    %v370 = vunpack.c.h.b16 %v77
    %v371 = vunpack.c.l.b16 %v78
    %v372 = vunpack.c.h.b16 %v78
    %v373 = vunpack.c.l.b16 %v79
    %v374 = vunpack.c.h.b16 %v79
    %v375 = vunpack.c.l.b16 %v80
    %v376 = vunpack.c.h.b16 %v80
    %v377 = vunpack.c.l.b16 %v81
    %v378 = vunpack.c.h.b16 %v81
    %v379 = vunpack.c.l.b16 %v82
    %v380 = vunpack.c.h.b16 %v82
    %v381 = vunpack.c.l.b16 %v83
    %v382 = vunpack.c.h.b16 %v83
    %v383 = vunpack.c.l.b16 %v84
    %v384 = vunpack.c.h.b16 %v84
    %v385 = vunpack.c.l.b16 %v85
    %v386 = vunpack.c.h.b16 %v85
    %v387 = vunpack.c.l.b16 %v86
    %v388 = vunpack.c.h.b16 %v86
    %v389 = vunpack.c.l.b16 %v87
    %v390 = vunpack.c.h.b16 %v87
    %v391 = vunpack.c.l.b16 %v88
    %v392 = vunpack.c.h.b16 %v88
    %v393 = vunpack.c.l.b16 %v89
    %v394 = vunpack.c.h.b16 %v89
    %v395 = vunpack.c.l.b16 %v90
    %v396 = vunpack.c.h.b16 %v90
    %v397 = vunpack.c.l.b16 %v91
    %v398 = vunpack.c.h.b16 %v91
    %v399 = vunpack.c.l.b16 %v92
    %v400 = vunpack.c.h.b16 %v92
    %v401 = vunpack.c.l.b16 %v93
    %v402 = vunpack.c.h.b16 %v93
    %v403 = vunpack.c.l.b16 %v94
    %v404 = vunpack.c.h.b16 %v94
    %v405 = vunpack.c.l.b16 %v95
    %v406 = vunpack.c.h.b16 %v95
    %v407 = vunpack.c.l.b16 %v96
    %v408 = vunpack.c.h.b16 %v96
    %v409 = vunpack.c.l.b16 %v97
    %v410 = vunpack.c.h.b16 %v97
    %v411 = vunpack.c.l.b16 %v98
    %v412 = vunpack.c.h.b16 %v98
    %v413 = vunpack.c.l.b16 %v99
    %v414 = vunpack.c.h.b16 %v99
    %v415 = vunpack.c.l.b16 %v100
    %v416 = vunpack.c.h.b16 %v100
    %v417 = vunpack.c.l.b16 %v101
    %v418 = vunpack.c.h.b16 %v101
    %v419 = vunpack.c.l.b16 %v102
    %v420 = vunpack.c.h.b16 %v102
    %v421 = vunpack.c.l.b16 %v103
    %v422 = vunpack.c.h.b16 %v103
    %v423 = vunpack.c.l.b16 %v104
    %v424 = vunpack.c.h.b16 %v104
    %v425 = vunpack.c.l.b16 %v105
    %v426 = vunpack.c.h.b16 %v105
    %v427 = vunpack.c.l.b16 %v106
    %v428 = vunpack.c.h.b16 %v106
    %v429 = vunpack.c.l.b16 %v107
    %v430 = vunpack.c.h.b16 %v107
    %v431 = vunpack.c.l.b16 %v108
    %v432 = vunpack.c.h.b16 %v108
    %v433 = vunpack.c.l.b16 %v109
    %v434 = vunpack.c.h.b16 %v109
    %v435 = vunpack.c.l.b16 %v110
    %v436 = vunpack.c.h.b16 %v110
    %v437 = vunpack.c.l.b16 %v111
    %v438 = vunpack.c.h.b16 %v111
    %v439 = vunpack.c.l.b16 %v112
    %v440 = vunpack.c.h.b16 %v112
    %v441 = vunpack.c.l.b16 %v113
    %v442 = vunpack.c.h.b16 %v113
    %v443 = vunpack.c.l.b16 %v114
    %v444 = vunpack.c.h.b16 %v114
    %v445 = vunpack.c.l.b16 %v115
    %v446 = vunpack.c.h.b16 %v115
    %v447 = vunpack.c.l.b16 %v116
    %v448 = vunpack.c.h.b16 %v116
    %v449 = vunpack.c.l.b16 %v117
    %v450 = vunpack.c.h.b16 %v117
    %v451 = vunpack.c.l.b16 %v118
    %v452 = vunpack.c.h.b16 %v118
    %v453 = vunpack.c.l.b16 %v119
    %v454 = vunpack.c.h.b16 %v119
    %v455 = vunpack.c.l.b16 %v120
    %v456 = vunpack.c.h.b16 %v120
    %v457 = vunpack.c.l.b16 %v121
    %v458 = vunpack.c.h.b16 %v121
    %v459 = vunpack.c.l.b16 %v122
    %v460 = vunpack.c.h.b16 %v122
    %v461 = vunpack.c.l.b16 %v123
    %v462 = vunpack.c.h.b16 %v123
    %v463 = vunpack.c.l.b16 %v124
    %v464 = vunpack.c.h.b16 %v124
    %v465 = vunpack.c.l.b16 %v125
    %v466 = vunpack.c.h.b16 %v125
    %v467 = vunpack.c.l.b16 %v126
    %v468 = vunpack.c.h.b16 %v126
    %v469 = vunpack.c.l.b16 %v127
    %v470 = vunpack.c.h.b16 %v127
    %v471 = vunpack.c.l.b16 %v128
    %v472 = vunpack.c.h.b16 %v128
    %v473 = vunpack.c.l.b16 %v129
    %v474 = vunpack.c.h.b16 %v129
    %v475 = vunpack.c.l.b16 %v130
    %v476 = vunpack.c.h.b16 %v130
    %v477 = vunpack.c.l.b16 %v131
    %v478 = vunpack.c.h.b16 %v131
    %v479 = vunpack.c.l.b16 %v132
    %v480 = vunpack.c.h.b16 %v132
    %v481 = vunpack.c.l.b16 %v133
    %v482 = vunpack.c.h.b16 %v133
    %v483 = vunpack.c.l.b16 %v134
    %v484 = vunpack.c.h.b16 %v134
    %v485 = vunpack.c.l.b16 %v135
    %v486 = vunpack.c.h.b16 %v135
    %v487 = vunpack.c.l.b16 %v136
    %v488 = vunpack.c.h.b16 %v136
    %v489 = vunpack.c.l.b16 %v137
    %v490 = vunpack.c.h.b16 %v137
    %v491 = vunpack.c.l.b16 %v138
    %v492 = vunpack.c.h.b16 %v138
    %v493 = vunpack.c.l.b16 %v139
    %v494 = vunpack.c.h.b16 %v139
    %v495 = vunpack.c.l.b16 %v140
    %v496 = vunpack.c.h.b16 %v140
    %v497 = vunpack.c.l.b16 %v141
    %v498 = vunpack.c.h.b16 %v141
    %v499 = vunpack.c.l.b16 %v142
    %v500 = vunpack.c.h.b16 %v142
    %v501 = vunpack.c.l.b16 %v143
    %v502 = vunpack.c.h.b16 %v143
    %v503 = vunpack.c.l.b16 %v144
    %v504 = vunpack.c.h.b16 %v144
    %v505 = vunpack.c.l.b16 %v145
    %v506 = vunpack.c.h.b16 %v145
    %v507 = vunpack.c.l.b16 %v146
    %v508 = vunpack.c.h.b16 %v146
    %v509 = vunpack.c.l.b16 %v147
    %v510 = vunpack.c.h.b16 %v147
    %v511 = vunpack.c.l.b16 %v148
    %v512 = vunpack.c.h.b16 %v148
    %v513 = vunpack.c.l.b16 %v149
    %v514 = vunpack.c.h.b16 %v149
    %v515 = vunpack.c.l.b16 %v150
    %v516 = vunpack.c.h.b16 %v150
    %v517 = vunpack.c.l.b16 %v151
    %v518 = vunpack.c.h.b16 %v151
    %v519 = vunpack.c.l.b16 %v152
    %v520 = vunpack.c.h.b16 %v152
    %v521 = vunpack.c.l.b16 %v153
    %v522 = vunpack.c.h.b16 %v153
    %v523 = vunpack.c.l.b16 %v154
    %v524 = vunpack.c.h.b16 %v154
    %v525 = vunpack.c.l.b16 %v155
    %v526 = vunpack.c.h.b16 %v155
    %v527 = vunpack.c.l.b16 %v156
    %v528 = vunpack.c.h.b16 %v156
    %v529 = vunpack.c.l.b16 %v157
    %v530 = vunpack.c.h.b16 %v157
    %v531 = vunpack.c.l.b16 %v158
    %v532 = vunpack.c.h.b16 %v158
    %v533 = vunpack.c.l.b16 %v159
    %v534 = vunpack.c.h.b16 %v159
    %v535 = vunpack.c.l.b16 %v160
    %v536 = vunpack.c.h.b16 %v160
    %v537 = vunpack.c.l.b16 %v161
    %v538 = vunpack.c.h.b16 %v161
    %v539 = vunpack.c.l.b16 %v162
    %v540 = vunpack.c.h.b16 %v162
    %v541 = vunpack.c.l.b16 %v163
    %v542 = vunpack.c.h.b16 %v163
    %v543 = vunpack.c.l.b16 %v164
    %v544 = vunpack.c.h.b16 %v164
    %v545 = vunpack.c.l.b16 %v165
    %v546 = vunpack.c.h.b16 %v165
    %v547 = vunpack.c.l.b16 %v166
    %v548 = vunpack.c.h.b16 %v166
    %v549 = vunpack.c.l.b16 %v167
    %v550 = vunpack.c.h.b16 %v167
    %v551 = vunpack.c.l.b16 %v168
    %v552 = vunpack.c.h.b16 %v168
    %v553 = vunpack.c.l.b16 %v169
    %v554 = vunpack.c.h.b16 %v169
    %v555 = vunpack.c.l.b16 %v170
    %v556 = vunpack.c.h.b16 %v170
    %v557 = vunpack.c.l.b16 %v171
    %v558 = vunpack.c.h.b16 %v171
    %v559 = vunpack.c.l.b16 %v172
    %v560 = vunpack.c.h.b16 %v172
    %v561 = vunpack.c.l.b16 %v173
    %v562 = vunpack.c.h.b16 %v173
    %v563 = vunpack.c.l.b16 %v174
    %v564 = vunpack.c.h.b16 %v174
    %v565 = vunpack.c.l.b16 %v175
    %v566 = vunpack.c.h.b16 %v175
    %v567 = vunpack.c.l.b16 %v176
    %v568 = vunpack.c.h.b16 %v176
    %v569 = vunpack.c.l.b16 %v177
    %v570 = vunpack.c.h.b16 %v177
    %v571 = vunpack.c.l.b16 %v178
    %v572 = vunpack.c.h.b16 %v178
    %v573 = vunpack.c.l.b16 %v179
    %v574 = vunpack.c.h.b16 %v179
    %v575 = vunpack.c.l.b16 %v180
    %v576 = vunpack.c.h.b16 %v180
    %v577 = vunpack.c.l.b16 %v181
    %v578 = vunpack.c.h.b16 %v181
    %v579 = vunpack.c.l.b16 %v182
    %v580 = vunpack.c.h.b16 %v182
    %v581 = vpack.c.b16 %v329, %v325
    %v582 = vpack.c.b16 %v330, %v326
    %v583 = vpack.c.b16 %v331, %v327
    %v584 = vpack.c.b16 %v332, %v328
    %v585 = vpack.c.b16 %v337, %v333
    %v586 = vpack.c.b16 %v338, %v334
    %v587 = vpack.c.b16 %v339, %v335
    %v588 = vpack.c.b16 %v340, %v336
    %v589 = vpack.c.b16 %v345, %v341
    %v590 = vpack.c.b16 %v346, %v342
    %v591 = vpack.c.b16 %v347, %v343
    %v592 = vpack.c.b16 %v348, %v344
    %v593 = vpack.c.b16 %v353, %v349
    %v594 = vpack.c.b16 %v354, %v350
    %v595 = vpack.c.b16 %v355, %v351
    %v596 = vpack.c.b16 %v356, %v352
    %v597 = vpack.c.b16 %v361, %v357
    %v598 = vpack.c.b16 %v362, %v358
    %v599 = vpack.c.b16 %v363, %v359
    %v600 = vpack.c.b16 %v364, %v360
    %v601 = vpack.c.b16 %v369, %v365
    %v602 = vpack.c.b16 %v370, %v366
    %v603 = vpack.c.b16 %v371, %v367
    %v604 = vpack.c.b16 %v372, %v368
    %v605 = vpack.c.b16 %v377, %v373
    %v606 = vpack.c.b16 %v378, %v374
    %v607 = vpack.c.b16 %v379, %v375
    %v608 = vpack.c.b16 %v380, %v376
    %v609 = vpack.c.b16 %v385, %v381
    %v610 = vpack.c.b16 %v386, %v382
    %v611 = vpack.c.b16 %v387, %v383
    %v612 = vpack.c.b16 %v388, %v384
    %v613 = vpack.c.b16 %v393, %v389
    %v614 = vpack.c.b16 %v394, %v390
    %v615 = vpack.c.b16 %v395, %v391
    %v616 = vpack.c.b16 %v396, %v392
    %v617 = vpack.c.b16 %v401, %v397
    %v618 = vpack.c.b16 %v402, %v398
    %v619 = vpack.c.b16 %v403, %v399
    %v620 = vpack.c.b16 %v404, %v400
    %v621 = vpack.c.b16 %v409, %v405
    %v622 = vpack.c.b16 %v410, %v406
    %v623 = vpack.c.b16 %v411, %v407
    %v624 = vpack.c.b16 %v412, %v408
    %v625 = vpack.c.b16 %v417, %v413
    %v626 = vpack.c.b16 %v418, %v414
    %v627 = vpack.c.b16 %v419, %v415
    %v628 = vpack.c.b16 %v420, %v416
    %v629 = vpack.c.b16 %v425, %v421
    %v630 = vpack.c.b16 %v426, %v422
    %v631 = vpack.c.b16 %v427, %v423
    %v632 = vpack.c.b16 %v428, %v424
    %v633 = vpack.c.b16 %v433, %v429
    %v634 = vpack.c.b16 %v434, %v430
    %v635 = vpack.c.b16 %v435, %v431
    %v636 = vpack.c.b16 %v436, %v432
    %v637 = vpack.c.b16 %v441, %v437
    %v638 = vpack.c.b16 %v442, %v438
    %v639 = vpack.c.b16 %v443, %v439
    %v640 = vpack.c.b16 %v444, %v440
    %v641 = vpack.c.b16 %v449, %v445
    %v642 = vpack.c.b16 %v450, %v446
    %v643 = vpack.c.b16 %v451, %v447
    %v644 = vpack.c.b16 %v452, %v448
    %v645 = vpack.c.b16 %v457, %v453
    %v646 = vpack.c.b16 %v458, %v454
    %v647 = vpack.c.b16 %v459, %v455
    %v648 = vpack.c.b16 %v460, %v456
    %v649 = vpack.c.b16 %v465, %v461
    %v650 = vpack.c.b16 %v466, %v462
    %v651 = vpack.c.b16 %v467, %v463
    %v652 = vpack.c.b16 %v468, %v464
    %v653 = vpack.c.b16 %v473, %v469
    %v654 = vpack.c.b16 %v474, %v470
    %v655 = vpack.c.b16 %v475, %v471
    %v656 = vpack.c.b16 %v476, %v472
    %v657 = vpack.c.b16 %v481, %v477
    %v658 = vpack.c.b16 %v482, %v478
    %v659 = vpack.c.b16 %v483, %v479
    %v660 = vpack.c.b16 %v484, %v480
    %v661 = vpack.c.b16 %v489, %v485
    %v662 = vpack.c.b16 %v490, %v486
    %v663 = vpack.c.b16 %v491, %v487
    %v664 = vpack.c.b16 %v492, %v488
    %v665 = vpack.c.b16 %v497, %v493
    %v666 = vpack.c.b16 %v498, %v494
    %v667 = vpack.c.b16 %v499, %v495
    %v668 = vpack.c.b16 %v500, %v496
    %v669 = vpack.c.b16 %v505, %v501
    %v670 = vpack.c.b16 %v506, %v502
    %v671 = vpack.c.b16 %v507, %v503
    %v672 = vpack.c.b16 %v508, %v504
    %v673 = vpack.c.b16 %v513, %v509
    %v674 = vpack.c.b16 %v514, %v510
    %v675 = vpack.c.b16 %v515, %v511
    %v676 = vpack.c.b16 %v516, %v512
    %v677 = vpack.c.b16 %v521, %v517
    %v678 = vpack.c.b16 %v522, %v518
    %v679 = vpack.c.b16 %v523, %v519
    %v680 = vpack.c.b16 %v524, %v520
    %v681 = vpack.c.b16 %v529, %v525
    %v682 = vpack.c.b16 %v530, %v526
    %v683 = vpack.c.b16 %v531, %v527
    %v684 = vpack.c.b16 %v532, %v528
    %v685 = vpack.c.b16 %v537, %v533
    %v686 = vpack.c.b16 %v538, %v534
    %v687 = vpack.c.b16 %v539, %v535
    %v688 = vpack.c.b16 %v540, %v536
    %v689 = vpack.c.b16 %v545, %v541
    %v690 = vpack.c.b16 %v546, %v542
    %v691 = vpack.c.b16 %v547, %v543
    %v692 = vpack.c.b16 %v548, %v544
    %v693 = vpack.c.b16 %v553, %v549
    %v694 = vpack.c.b16 %v554, %v550
    %v695 = vpack.c.b16 %v555, %v551
    %v696 = vpack.c.b16 %v556, %v552
    %v697 = vpack.c.b16 %v561, %v557
    %v698 = vpack.c.b16 %v562, %v558
    %v699 = vpack.c.b16 %v563, %v559
    %v700 = vpack.c.b16 %v564, %v560
    %v701 = vpack.c.b16 %v569, %v565
    %v702 = vpack.c.b16 %v570, %v566
    %v703 = vpack.c.b16 %v571, %v567
    %v704 = vpack.c.b16 %v572, %v568
    %v705 = vpack.c.b16 %v577, %v573
    %v706 = vpack.c.b16 %v578, %v574
    %v707 = vpack.c.b16 %v579, %v575
    %v708 = vpack.c.b16 %v580, %v576
    %837 = vmatprep.subr.bf16.mxu0 %v582
    %838 = vmatpush1.bf16.msra.mxu0 %v581
    %839 = vmatprep.subr.bf16.mxu0 %v586
    %840 = vmatpush1.bf16.msra.mxu0 %v585
    %841 = vmatprep.subr.bf16.mxu0 %v590
    %842 = vmatpush1.bf16.msra.mxu0 %v589
    %843 = vmatprep.subr.bf16.mxu0 %v594
    %844 = vmatpush1.bf16.msra.mxu0 %v593
    %845 = vmatprep.subr.bf16.mxu0 %v598
    %846 = vmatpush1.bf16.msra.mxu0 %v597
    %847 = vmatprep.subr.bf16.mxu0 %v602
    %848 = vmatpush1.bf16.msra.mxu0 %v601
    %849 = vmatprep.subr.bf16.mxu0 %v606
    %850 = vmatpush1.bf16.msra.mxu0 %v605
    %851 = vmatprep.subr.bf16.mxu0 %v610
    %852 = vmatpush1.bf16.msra.mxu0 %v609
    %853 = vmatprep.subr.bf16.mxu0 %v614
    %854 = vmatpush1.bf16.msra.mxu0 %v613
    %855 = vmatprep.subr.bf16.mxu0 %v618
    %856 = vmatpush1.bf16.msra.mxu0 %v617
    %857 = vmatprep.subr.bf16.mxu0 %v622
    %858 = vmatpush1.bf16.msra.mxu0 %v621
    %859 = vmatprep.subr.bf16.mxu0 %v626
    %860 = vmatpush1.bf16.msra.mxu0 %v625
    %861 = vmatprep.subr.bf16.mxu0 %v630
    %862 = vmatpush1.bf16.msra.mxu0 %v629
    %863 = vmatprep.subr.bf16.mxu0 %v634
    %864 = vmatpush1.bf16.msra.mxu0 %v633
    %865 = vmatprep.subr.bf16.mxu0 %v638
    %866 = vmatpush1.bf16.msra.mxu0 %v637
    %867 = vmatprep.subr.bf16.mxu0 %v642
    %868 = vmatpush1.bf16.msra.mxu0 %v641
    %869 = vmatprep.mubr.bf16.mxu0 %v190
    %870 = vmatmul.mubr.bf16.gmra.mrb[0].mxu0 %v189
    %v871 = vpop.f32.mrb[0].mxu0
    %v872 = vadd.f32 0.0, %v871
    %v873 = vpop.f32.mrb[0].mxu0
    %v874 = vadd.f32 0.0, %v873
    %v875 = vpop.f32.mrb[0].mxu0
    %v876 = vpop.f32.mrb[0].mxu0
    %877 = vdwg.mxu0
    %878 = vmatprep.subr.bf16.mxu0 %v646
    %879 = vmatpush1.bf16.msra.mxu0 %v645
    %880 = vmatprep.subr.bf16.mxu0 %v650
    %881 = vmatpush1.bf16.msra.mxu0 %v649
    %882 = vmatprep.subr.bf16.mxu0 %v654
    %883 = vmatpush1.bf16.msra.mxu0 %v653
    %884 = vmatprep.subr.bf16.mxu0 %v658
    %885 = vmatpush1.bf16.msra.mxu0 %v657
    %886 = vmatprep.subr.bf16.mxu0 %v662
    %887 = vmatpush1.bf16.msra.mxu0 %v661
    %888 = vmatprep.subr.bf16.mxu0 %v666
    %889 = vmatpush1.bf16.msra.mxu0 %v665
    %890 = vmatprep.subr.bf16.mxu0 %v670
    %891 = vmatpush1.bf16.msra.mxu0 %v669
    %892 = vmatprep.subr.bf16.mxu0 %v674
    %893 = vmatpush1.bf16.msra.mxu0 %v673
    %894 = vmatprep.subr.bf16.mxu0 %v678
    %895 = vmatpush1.bf16.msra.mxu0 %v677
    %896 = vmatprep.subr.bf16.mxu0 %v682
    %897 = vmatpush1.bf16.msra.mxu0 %v681
    %898 = vmatprep.subr.bf16.mxu0 %v686
    %899 = vmatpush1.bf16.msra.mxu0 %v685
    %900 = vmatprep.subr.bf16.mxu0 %v690
    %901 = vmatpush1.bf16.msra.mxu0 %v689
    %902 = vmatprep.subr.bf16.mxu0 %v694
    %903 = vmatpush1.bf16.msra.mxu0 %v693
    %904 = vmatprep.subr.bf16.mxu0 %v698
    %905 = vmatpush1.bf16.msra.mxu0 %v697
    %906 = vmatprep.subr.bf16.mxu0 %v702
    %907 = vmatpush1.bf16.msra.mxu0 %v701
    %908 = vmatprep.subr.bf16.mxu0 %v706
    %909 = vmatpush1.bf16.msra.mxu0 %v705
    %910 = vmatprep.mubr.bf16.mxu0 %v192
    %911 = vmatmul.mubr.bf16.gmra.mrb[0].mxu0 %v191
    %v912 = vpop.f32.mrb[0].mxu0
    %v913 = vadd.f32 %v872, %v912
    %v914 = vpop.f32.mrb[0].mxu0
    %v915 = vadd.f32 %v874, %v914
    %v916 = vpop.f32.mrb[0].mxu0
    %v917 = vpop.f32.mrb[0].mxu0
    %918 = vdwg.mxu0
    %919 = vmatprep.subr.bf16.mxu0 %v584
    %920 = vmatpush1.bf16.msra.mxu0 %v583
    %921 = vmatprep.subr.bf16.mxu0 %v588
    %922 = vmatpush1.bf16.msra.mxu0 %v587
    %923 = vmatprep.subr.bf16.mxu0 %v592
    %924 = vmatpush1.bf16.msra.mxu0 %v591
    %925 = vmatprep.subr.bf16.mxu0 %v596
    %926 = vmatpush1.bf16.msra.mxu0 %v595
    %927 = vmatprep.subr.bf16.mxu0 %v600
    %928 = vmatpush1.bf16.msra.mxu0 %v599
    %929 = vmatprep.subr.bf16.mxu0 %v604
    %930 = vmatpush1.bf16.msra.mxu0 %v603
    %931 = vmatprep.subr.bf16.mxu0 %v608
    %932 = vmatpush1.bf16.msra.mxu0 %v607
    %933 = vmatprep.subr.bf16.mxu0 %v612
    %934 = vmatpush1.bf16.msra.mxu0 %v611
    %935 = vmatprep.subr.bf16.mxu0 %v616
    %936 = vmatpush1.bf16.msra.mxu0 %v615
    %937 = vmatprep.subr.bf16.mxu0 %v620
    %938 = vmatpush1.bf16.msra.mxu0 %v619
    %939 = vmatprep.subr.bf16.mxu0 %v624
    %940 = vmatpush1.bf16.msra.mxu0 %v623
    %941 = vmatprep.subr.bf16.mxu0 %v628
    %942 = vmatpush1.bf16.msra.mxu0 %v627
    %943 = vmatprep.subr.bf16.mxu0 %v632
    %944 = vmatpush1.bf16.msra.mxu0 %v631
    %945 = vmatprep.subr.bf16.mxu0 %v636
    %946 = vmatpush1.bf16.msra.mxu0 %v635
    %947 = vmatprep.subr.bf16.mxu0 %v640
    %948 = vmatpush1.bf16.msra.mxu0 %v639
    %949 = vmatprep.subr.bf16.mxu0 %v644
    %950 = vmatpush1.bf16.msra.mxu0 %v643
    %951 = vmatprep.mubr.bf16.mxu0 %v190
    %952 = vmatmul.mubr.bf16.gmra.mrb[0].mxu0 %v189
    %v953 = vpop.f32.mrb[0].mxu0
    %v954 = vadd.f32 0.0, %v953
    %v955 = vpop.f32.mrb[0].mxu0
    %v956 = vadd.f32 0.0, %v955
    %v957 = vpop.f32.mrb[0].mxu0
    %v958 = vpop.f32.mrb[0].mxu0
    %959 = vdwg.mxu0
    %960 = vmatprep.subr.bf16.mxu0 %v648
    %961 = vmatpush1.bf16.msra.mxu0 %v647
    %962 = vmatprep.subr.bf16.mxu0 %v652
    %963 = vmatpush1.bf16.msra.mxu0 %v651
    %964 = vmatprep.subr.bf16.mxu0 %v656
    %965 = vmatpush1.bf16.msra.mxu0 %v655
    %966 = vmatprep.subr.bf16.mxu0 %v660
    %967 = vmatpush1.bf16.msra.mxu0 %v659
    %968 = vmatprep.subr.bf16.mxu0 %v664
    %969 = vmatpush1.bf16.msra.mxu0 %v663
    %970 = vmatprep.subr.bf16.mxu0 %v668
    %971 = vmatpush1.bf16.msra.mxu0 %v667
    %972 = vmatprep.subr.bf16.mxu0 %v672
    %973 = vmatpush1.bf16.msra.mxu0 %v671
    %974 = vmatprep.subr.bf16.mxu0 %v676
    %975 = vmatpush1.bf16.msra.mxu0 %v675
    %976 = vmatprep.subr.bf16.mxu0 %v680
    %977 = vmatpush1.bf16.msra.mxu0 %v679
    %978 = vmatprep.subr.bf16.mxu0 %v684
    %979 = vmatpush1.bf16.msra.mxu0 %v683
    %980 = vmatprep.subr.bf16.mxu0 %v688
    %981 = vmatpush1.bf16.msra.mxu0 %v687
    %982 = vmatprep.subr.bf16.mxu0 %v692
    %983 = vmatpush1.bf16.msra.mxu0 %v691
    %984 = vmatprep.subr.bf16.mxu0 %v696
    %985 = vmatpush1.bf16.msra.mxu0 %v695
    %986 = vmatprep.subr.bf16.mxu0 %v700
    %987 = vmatpush1.bf16.msra.mxu0 %v699
    %988 = vmatprep.subr.bf16.mxu0 %v704
    %989 = vmatpush1.bf16.msra.mxu0 %v703
    %990 = vmatprep.subr.bf16.mxu0 %v708
    %991 = vmatpush1.bf16.msra.mxu0 %v707
    %992 = vmatprep.mubr.bf16.mxu0 %v192
    %993 = vmatmul.mubr.bf16.gmra.mrb[0].mxu0 %v191
    %v994 = vpop.f32.mrb[0].mxu0
    %v995 = vadd.f32 %v954, %v994
    %v996 = vpop.f32.mrb[0].mxu0
    %v997 = vadd.f32 %v956, %v996
    %v998 = vpop.f32.mrb[0].mxu0
    %v999 = vpop.f32.mrb[0].mxu0
    %1000 = vdwg.mxu0
    %v1001 = vadd.f32 %v49, %v913
    %v1002 = vadd.f32 %v50, %v915
    %v1003 = vadd.f32 %v51, %v995
    %v1004 = vadd.f32 %v52, %v997
    %1005 = vst [vmem:[#allocation2] sm:$0xff] %v1001
    %1006 = vst [vmem:[#allocation2 + $0x8] sm:$0xff] %v1002
    %1007 = vst [vmem:[#allocation2 + $0x10] sm:$0xff] %v1003
    %1008 = vst [vmem:[#allocation2 + $0x18] sm:$0xff] %v1004
    // Predicated region
    $region26: #{tpu_custom_call.1} parent=1 // pred_check
      %p1009 = pneg %p41
    $region27: #{tpu_custom_call.1} parent=1 // pred_check_branch
      %1011 = sbr.rel (%p1009) target = $region29
    $region28: #{tpu_custom_call.1} parent=1 // pred_region
      %v1012 = vld [vmem:[#allocation2] sm:$0xff]
      %v1013 = vld [vmem:[#allocation2 + $0x8] sm:$0xff]
      %v1014 = vld [vmem:[#allocation2 + $0x10] sm:$0xff]
      %v1015 = vld [vmem:[#allocation2 + $0x18] sm:$0xff]
      %v1016 = vld [vmem:[%s2] sm:$0xf]
      %v1018 = vlaneseq
      %v1019 = vshrl.u32 %v1018, 7
      %v1020 = vsub.s32 0, %v1019
      %v1021 = vrot.slane %v1016, %v1020
      %v1022 = vlaneseq
      %v1023 = vshrl.u32 %v1022, 7
      %v1024 = vsub.s32 1, %v1023
      %v1025 = vrot.slane %v1016, %v1024
      %v1026 = vlaneseq
      %v1027 = vshrl.u32 %v1026, 7
      %v1028 = vsub.s32 2, %v1027
      %v1029 = vrot.slane %v1016, %v1028
      %v1030 = vlaneseq
      %v1031 = vshrl.u32 %v1030, 7
      %v1032 = vsub.s32 3, %v1031
      %v1033 = vrot.slane %v1016, %v1032
      %v1038 = vadd.f32 %v1012, %v1021
      %v1039 = vadd.f32 %v1013, %v1025
      %v1040 = vadd.f32 %v1014, %v1029
      %v1041 = vadd.f32 %v1015, %v1033
      %1042 = vst [vmem:[#allocation8] sm:$0xff] %v1038
      %1043 = vst [vmem:[#allocation8 + $0x8] sm:$0xff] %v1039
      %1044 = vst [vmem:[#allocation8 + $0x10] sm:$0xff] %v1040
      %1045 = vst [vmem:[#allocation8 + $0x18] sm:$0xff] %v1041
    $region29: #{tpu_custom_call.1} parent=1 // pred_fallthru
      _
    // Predicated region
    $region30: #{tpu_custom_call.1} parent=1 // pred_check
      _
    $region31: #{tpu_custom_call.1} parent=1 // pred_check_branch
      %1047 = sbr.rel (0) target = $region33
    $region32: #{tpu_custom_call.1} parent=1 // pred_region
      %s1049 = ssub.s32 512, 512
      %1050 = vsyncadd [#allocation5], %s1049
      %s1052 = sshll.u32 [#allocation8], 4
      %s1053 = int_to_ptr.vmem [resolvable:$true] %s1052
      %1055 = dma.vmem_to_hbm [thread:$0]  %s1053, 512, %s3, [#allocation5]
    $region33: #{tpu_custom_call.1} parent=1 // pred_fallthru
      _
    // Predicated region
    $region34: #{tpu_custom_call.1} parent=1 // pred_check
      _
    $region35: #{tpu_custom_call.1} parent=1 // pred_check_branch
      %1057 = sbr.rel (0) target = $region37
    $region36: #{tpu_custom_call.1} parent=1 // pred_region
      %1058 = dma.done [#allocation5], 512
    $region37: #{tpu_custom_call.1} parent=1 // pred_fallthru
      _
    %1059 = vsyncpa [#allocation4], 1
    %1060 = vsyncpa [#allocation7], 1
    %1061 = vsyncpa [#allocation5], 1

</llo_original>
